<compile_context>
chip_gen: v6e
topology: v6e:2x2x1
jax: 0.10.0
libtpu: 0.0.40
codegen_flags: <defaults>
</compile_context>

<pallas_src>
import functools

import jax
import jax.numpy as jnp
from jax.experimental import pallas as pl
from jax.experimental.pallas import tpu as pltpu

EPS = 1e-5


# --------------------------------------------------------------------------- #
# Host-side sizing helpers (generation aware).
# --------------------------------------------------------------------------- #
def _vmem_capacity_bytes():
    try:
        info = pltpu.get_tpu_info()
        cap = getattr(info, "vmem_capacity_bytes", None)
        if cap:
            return int(cap)
    except Exception:  # pragma: no cover - defensive (interpret mode, CPU, ...)
        pass
    return 64 * 1024 * 1024  # conservative default (v7x-sized)


def _pick_hw_tile(hw, c, tile_budget_bytes, max_tile=None):
    """Lane (HW) tile size: multiple of 128, close to the VMEM tile budget."""
    target = max(tile_budget_bytes // (c * 4), 128)
    if max_tile is not None:
        target = min(target, max(int(max_tile), 128))
    target = max((target // 128) * 128, 128)
    if hw <= target:
        return hw  # single block == full array extent (always legal)
    # Prefer a 128-multiple divisor of HW near the target -> no host padding,
    # but never accept less than half the target (avoids the old 128-lane collapse).
    if hw % 128 == 0:
        t = target
        while t >= max(128, target // 2):
            if hw % t == 0:
                return t
            t -= 128
    return target  # ragged: x is zero-padded to a multiple of `target` on the host


def _pick_acc_width(hw_tile, max_chunks=32):
    """Width of the lane-partial stats accumulators (must divide hw_tile)."""
    if hw_tile % 128 != 0:
        return hw_tile  # tiny single-tile case
    acc_w = 128
    while hw_tile % acc_w != 0 or hw_tile // acc_w > max_chunks:
        acc_w += 128
    return acc_w


# --------------------------------------------------------------------------- #
# In-kernel helpers.
# --------------------------------------------------------------------------- #
def _accum_stats(x, sum_ref, sumsq_ref, acc_w):
    """VPU-only accumulation of sum / sumsq into (C, acc_w) lane-partial scratch."""
    s = sum_ref[...]
    sq = sumsq_ref[...]
    for j in range(x.shape[1] // acc_w):          # static, 128-aligned value slices
        blk = x[:, j * acc_w:(j + 1) * acc_w]
        s = s + blk
        sq = sq + blk * blk
    sum_ref[...] = s
    sumsq_ref[...] = sq


def _finalize_bias(sum_ref, sumsq_ref, w1a_ref, w1b_ref, w2_ref, wfv_ref, bfc_ref,
                   hw_total):
    """Cross-lane reduce (once per batch) + tiny MLP -> per-batch bias column."""
    ssum = jnp.sum(sum_ref[...], axis=1, keepdims=True)       # (C, 1)  one XLU reduce
    ssq = jnp.sum(sumsq_ref[...], axis=1, keepdims=True)      # (C, 1)
    mean = ssum * (1.0 / hw_total)
    inv_denom = 1.0 / max(hw_total - 1, 1)                    # torch var: ddof=1
    var = jnp.maximum((ssq - hw_total * mean * mean) * inv_denom, 0.0) + EPS
    std = jnp.sqrt(var)
    h1 = jnp.maximum(
        jnp.dot(w1a_ref[...], mean, preferred_element_type=jnp.float32)
        + jnp.dot(w1b_ref[...], std, preferred_element_type=jnp.float32), 0.0)
    v = jnp.dot(w2_ref[...], h1, preferred_element_type=jnp.float32)  # (out_nc, 1)
    return jnp.dot(wfv_ref[...], v, preferred_element_type=jnp.float32) + bfc_ref[...]


# --------------------------------------------------------------------------- #
# Kernels.
# --------------------------------------------------------------------------- #
def _gam_fused_kernel(x_ref, w1a_ref, w1b_ref, w2_ref, wfv_ref, bfc_ref, wfx_ref,
                      o_ref, xres_ref, sum_ref, sumsq_ref,
                      *, hw_total, hw_tile, n_tiles, acc_w):
    """Single-pass GAM: x streamed once, kept resident in VMEM, y written once."""
    t = pl.program_id(1)

    @pl.when(t == 0)
    def _():
        sum_ref[...] = jnp.zeros_like(sum_ref)
        sumsq_ref[...] = jnp.zeros_like(sumsq_ref)

    x = x_ref[0]                       # (C, hw_tile), lane-dense
    xres_ref[t] = x                    # resident copy -> no second HBM read of x
    _accum_stats(x, sum_ref, sumsq_ref, acc_w)

    @pl.when(t == n_tiles - 1)
    def _():
        bias = _finalize_bias(sum_ref, sumsq_ref, w1a_ref, w1b_ref, w2_ref,
                              wfv_ref, bfc_ref, hw_total)         # (out_nc, 1)
        wfx = wfx_ref[...]
        for j in range(n_tiles):       # small static loop (n_tiles bounded by VMEM)
            yj = jnp.dot(wfx, xres_ref[j], preferred_element_type=jnp.float32) + bias
            o_ref[0, :, j * hw_tile:(j + 1) * hw_tile] = yj


def _gam_stats_kernel(x_ref, w1a_ref, w1b_ref, w2_ref, wfv_ref, bfc_ref,
                      bias_ref, sum_ref, sumsq_ref,
                      *, hw_total, n_tiles, acc_w):
    """Fallback pass 1: per-(N,C) stats -> tiny MLP -> per-batch bias column."""
    t = pl.program_id(1)

    @pl.when(t == 0)
    def _():
        sum_ref[...] = jnp.zeros_like(sum_ref)
        sumsq_ref[...] = jnp.zeros_like(sumsq_ref)

    _accum_stats(x_ref[0], sum_ref, sumsq_ref, acc_w)

    @pl.when(t == n_tiles - 1)
    def _():
        bias_ref[0] = _finalize_bias(sum_ref, sumsq_ref, w1a_ref, w1b_ref, w2_ref,
                                     wfv_ref, bfc_ref, hw_total)


def _gam_fuse_kernel(x_ref, wfx_ref, bias_ref, o_ref):
    """Fallback pass 2: lane-dense y_tile = Wf_x @ x_tile + bias."""
    y = jnp.dot(wfx_ref[...], x_ref[0], preferred_element_type=jnp.float32)
    o_ref[0] = y + bias_ref[0]


# --------------------------------------------------------------------------- #
# Wrapper.
# --------------------------------------------------------------------------- #
def gam_forward(x_nchw, w1, w2, wf, bf, *, max_hw_tile=None, force_two_pass=False):
    N, C, H, W = x_nchw.shape
    out_nc = wf.shape[0]
    HW = H * W
    x_flat = x_nchw.reshape(N, C, HW)  # channels -> sublanes, HW -> lanes (no transpose)

    # Generation-aware budgets (v5e/v6e: 128 MiB VMEM, v7x: 64 MiB).
    cap = _vmem_capacity_bytes()
    vmem_limit = max((cap * 3) // 4, 32 * 1024 * 1024)
    tile_budget = max(cap // 16, 2 << 20)

    hw_tile = _pick_hw_tile(HW, C, tile_budget, max_tile=max_hw_tile)
    n_tiles = pl.cdiv(HW, hw_tile)
    hw_padded = n_tiles * hw_tile
    acc_w = _pick_acc_width(hw_tile)

    if hw_padded != HW:
        # Zero padding leaves sum/sumsq untouched (true HW used for the denominators).
        # TODO(synk): in-kernel masking of the last tile to avoid this extra copy.
        x_flat = jnp.pad(x_flat, ((0, 0), (0, 0), (0, hw_padded - HW)))

    # Host-side layout plumbing: pre-split the 1x1-conv weights so the kernels
    # never slice or transpose.
    w1a = w1[:, :C]                 # (hidden, C)  acts on mean
    w1b = w1[:, C:]                 # (hidden, C)  acts on std
    wfx = wf[:, :C]                 # (out_nc, C)  acts on x
    wfv = wf[:, C:]                 # (out_nc, C)  acts on the global vector
    bf_col = bf.reshape(out_nc, 1)  # (out_nc, 1)

    x_spec = pl.BlockSpec((1, C, hw_tile), lambda n, t: (n, 0, t))
    weight_specs = [
        pl.BlockSpec(w1a.shape, lambda n, t: (0, 0)),
        pl.BlockSpec(w1b.shape, lambda n, t: (0, 0)),
        pl.BlockSpec(w2.shape, lambda n, t: (0, 0)),
        pl.BlockSpec(wfv.shape, lambda n, t: (0, 0)),
        pl.BlockSpec(bf_col.shape, lambda n, t: (0, 0)),
    ]
    wfx_spec = pl.BlockSpec(wfx.shape, lambda n, t: (0, 0))

    # VMEM estimate for the fused single-read path.
    fused_bytes = (2 * C * hw_tile * 4            # double-buffered streamed x tile
                   + n_tiles * C * hw_tile * 4    # resident x scratch
                   + 2 * out_nc * hw_padded * 4   # output block (assume 2 buffers)
                   + 2 * C * acc_w * 4            # lane-partial accumulators
                   + 4 * (w1.size + w2.size + wf.size + bf.size)
                   + (2 << 20))                   # headroom
    use_fused = (not force_two_pass) and fused_bytes <= vmem_limit

    if use_fused:
        y = pl.pallas_call(
            functools.partial(_gam_fused_kernel, hw_total=HW, hw_tile=hw_tile,
                              n_tiles=n_tiles, acc_w=acc_w),
            out_shape=jax.ShapeDtypeStruct((N, out_nc, hw_padded), jnp.float32),
            grid_spec=pltpu.PrefetchScalarGridSpec(
                num_scalar_prefetch=0,
                grid=(N, n_tiles),
                in_specs=[x_spec] + weight_specs + [wfx_spec],
                out_specs=pl.BlockSpec((1, out_nc, hw_padded), lambda n, t: (n, 0, 0)),
                scratch_shapes=[pltpu.VMEM((n_tiles, C, hw_tile), jnp.float32),
                                pltpu.VMEM((C, acc_w), jnp.float32),
                                pltpu.VMEM((C, acc_w), jnp.float32)],
            ),
            compiler_params=pltpu.CompilerParams(
                dimension_semantics=("parallel", "arbitrary"),
                vmem_limit_bytes=vmem_limit),
        )(x_flat, w1a, w1b, w2, wfv, bf_col, wfx)
    else:
        # ---- Pass 1: stats + tiny MLP -> per-batch bias column (out_nc, 1). ---- #
        bias_col = pl.pallas_call(
            functools.partial(_gam_stats_kernel, hw_total=HW, n_tiles=n_tiles,
                              acc_w=acc_w),
            out_shape=jax.ShapeDtypeStruct((N, out_nc, 1), jnp.float32),
            grid_spec=pltpu.PrefetchScalarGridSpec(
                num_scalar_prefetch=0,
                grid=(N, n_tiles),
                in_specs=[x_spec] + weight_specs,
                out_specs=pl.BlockSpec((1, out_nc, 1), lambda n, t: (n, 0, 0)),
                scratch_shapes=[pltpu.VMEM((C, acc_w), jnp.float32),
                                pltpu.VMEM((C, acc_w), jnp.float32)],
            ),
            compiler_params=pltpu.CompilerParams(
                dimension_semantics=("parallel", "arbitrary"),
                vmem_limit_bytes=vmem_limit),
        )(x_flat, w1a, w1b, w2, wfv, bf_col)

        # ---- Pass 2: streaming, lane-dense fuse over (batch, HW tiles). -------- #
        y = pl.pallas_call(
            _gam_fuse_kernel,
            out_shape=jax.ShapeDtypeStruct((N, out_nc, hw_padded), jnp.float32),
            grid_spec=pltpu.PrefetchScalarGridSpec(
                num_scalar_prefetch=0,
                grid=(N, n_tiles),
                in_specs=[x_spec, wfx_spec,
                          pl.BlockSpec((1, out_nc, 1), lambda n, t: (n, 0, 0))],
                out_specs=pl.BlockSpec((1, out_nc, hw_tile), lambda n, t: (n, 0, t)),
            ),
            compiler_params=pltpu.CompilerParams(
                dimension_semantics=("parallel", "parallel"),
                vmem_limit_bytes=vmem_limit),
        )(x_flat, wfx, bias_col)

    if hw_padded != HW:
        y = y[:, :, :HW]
    return y.reshape(N, out_nc, H, W)


# --------------------------------------------------------------------------- #
# Plain-JAX reference mirroring the PyTorch forward.
# --------------------------------------------------------------------------- #
def gam_reference(x, w1, w2, wf, bf):
    N, C, H, W = x.shape
    xf = x.reshape(N, C, H * W)
    mean = xf.mean(axis=2)
    std = jnp.sqrt(xf.var(axis=2, ddof=1) + EPS)
    stats = jnp.concatenate([mean, std], axis=1)                  # (N, 2C)
    h1 = jnp.maximum(stats @ w1.T, 0.0)
    vec = h1 @ w2.T                                               # (N, out_nc)
    x_hw = jnp.transpose(x, (0, 2, 3, 1)).reshape(N, H * W, C)
    y = x_hw @ wf[:, :C].T + (vec @ wf[:, C:].T + bf)[:, None, :]
    out_nc = wf.shape[0]
    return jnp.transpose(y.reshape(N, H, W, out_nc), (0, 3, 1, 2))


if __name__ == "__main__":
    # Shapes consistent with GAM(in_nc=16, out_nc=16, reduction=8)
    # (out_nc must equal in_nc for the expand_as in the original forward).
    N, C = 2, 16
    out_nc, reduction = 16, 8
    hidden = C // reduction  # = 2

    key = jax.random.PRNGKey(0)
    kx, k1, k2, kf, kb = jax.random.split(key, 5)

    # 1x1 conv weights squeezed to 2-D.
    w1 = jax.random.normal(k1, (hidden, 2 * C), dtype=jnp.float32) * 0.1   # conv[0]
    w2 = jax.random.normal(k2, (out_nc, hidden), dtype=jnp.float32) * 0.1  # conv[2]
    wf = jax.random.normal(kf, (out_nc, 2 * C), dtype=jnp.float32) * 0.1   # fuse conv
    bf = jax.random.normal(kb, (out_nc,), dtype=jnp.float32) * 0.1         # fuse bias

    def check(x, ref, out, tag):
        assert out.shape == ref.shape, tag
        assert jnp.allclose(out, ref, atol=1e-4, rtol=1e-4), f"mismatch vs reference ({tag})"

    # 1) Fused single-tile path (whole image in one block, single HBM read of x).
    x = jax.random.normal(kx, (N, C, 16, 16), dtype=jnp.float32)
    ref = gam_reference(x, w1, w2, wf, bf)
    out = jax.block_until_ready(gam_forward(x, w1, w2, wf, bf))
    check(x, ref, out, "fused single tile")

    # 2) Fused multi-tile path (resident VMEM copy across the stats sweep).
    out = jax.block_until_ready(gam_forward(x, w1, w2, wf, bf, max_hw_tile=128))
    check(x, ref, out, "fused multi tile")

    # 3) Two-pass fallback path (large-slab code path, forced here).
    out = jax.block_until_ready(
        gam_forward(x, w1, w2, wf, bf, max_hw_tile=128, force_two_pass=True))
    check(x, ref, out, "two-pass fallback")

    # 4) Ragged spatial size (HW not a multiple of the tile -> host zero-pad path).
    xr = jax.random.normal(kx, (N, C, 10, 20), dtype=jnp.float32)
    refr = gam_reference(xr, w1, w2, wf, bf)
    outr = jax.block_until_ready(gam_forward(xr, w1, w2, wf, bf, max_hw_tile=128))
    check(xr, refr, outr, "ragged HW")

    print("KERNEL_OK")
</pallas_src>

<mosaic_0001>
module attributes {stable_mosaic.version = 11 : i64} {
  func.func @_gam_fused_kernel(%arg0: i32, %arg1: i32, %arg2: memref<1x16x256xf32, #tpu.memory_space<vmem>>, %arg3: memref<2x16xf32, #tpu.memory_space<vmem>>, %arg4: memref<2x16xf32, #tpu.memory_space<vmem>>, %arg5: memref<16x2xf32, #tpu.memory_space<vmem>>, %arg6: memref<16x16xf32, #tpu.memory_space<vmem>>, %arg7: memref<16x1xf32, #tpu.memory_space<vmem>>, %arg8: memref<16x16xf32, #tpu.memory_space<vmem>>, %arg9: memref<1x16x256xf32, #tpu.memory_space<vmem>>, %arg10: memref<1x16x256xf32, #tpu.memory_space<vmem>>, %arg11: memref<16x128xf32, #tpu.memory_space<vmem>>, %arg12: memref<16x128xf32, #tpu.memory_space<vmem>>) attributes {dimension_semantics = [#tpu.dimension_semantics<parallel>, #tpu.dimension_semantics<arbitrary>], iteration_bounds = array<i64: 2, 1>, scalar_prefetch = 0 : i64, scratch_operands = 3 : i64, tpu.core_type = #tpu.core_type<tc>, window_params = [{transform_indices = @transform_0, window_bounds = array<i64: 1, 16, 256>}, {pipeline_mode = #tpu.pipeline_mode<synchronous>, transform_indices = @transform_1, window_bounds = array<i64: 2, 16>}, {pipeline_mode = #tpu.pipeline_mode<synchronous>, transform_indices = @transform_2, window_bounds = array<i64: 2, 16>}, {pipeline_mode = #tpu.pipeline_mode<synchronous>, transform_indices = @transform_3, window_bounds = array<i64: 16, 2>}, {pipeline_mode = #tpu.pipeline_mode<synchronous>, transform_indices = @transform_4, window_bounds = array<i64: 16, 16>}, {pipeline_mode = #tpu.pipeline_mode<synchronous>, transform_indices = @transform_5, window_bounds = array<i64: 16, 1>}, {pipeline_mode = #tpu.pipeline_mode<synchronous>, transform_indices = @transform_6, window_bounds = array<i64: 16, 16>}, {transform_indices = @transform_7, window_bounds = array<i64: 1, 16, 256>}]} {
    %c0_i32 = arith.constant 0 : i32
    %0 = arith.cmpi eq, %arg1, %c0_i32 : i32
    %1 = arith.extui %0 : i1 to i32
    %c0_i32_0 = arith.constant 0 : i32
    %2 = arith.cmpi ne, %1, %c0_i32_0 : i32
    scf.if %2 {
      %cst = arith.constant 0.000000e+00 : f32
      %24 = vector.broadcast %cst : f32 to vector<16x128xf32>
      %c0_15 = arith.constant 0 : index
      %c0_16 = arith.constant 0 : index
      %25 = vector.load %arg11[%c0_15, %c0_16] : memref<16x128xf32, #tpu.memory_space<vmem>>, vector<16x128xf32>
      tpu.vector_store %arg11[%c0_15, %c0_16], %24 {strides = array<i32>} : memref<16x128xf32, #tpu.memory_space<vmem>>, vector<16x128xf32>,
      %cst_17 = arith.constant 0.000000e+00 : f32
      %26 = vector.broadcast %cst_17 : f32 to vector<16x128xf32>
      %c0_18 = arith.constant 0 : index
      %c0_19 = arith.constant 0 : index
      %27 = vector.load %arg12[%c0_18, %c0_19] : memref<16x128xf32, #tpu.memory_space<vmem>>, vector<16x128xf32>
      tpu.vector_store %arg12[%c0_18, %c0_19], %26 {strides = array<i32>} : memref<16x128xf32, #tpu.memory_space<vmem>>, vector<16x128xf32>,
    } else {
    }
    %c0 = arith.constant 0 : index
    %c0_1 = arith.constant 0 : index
    %c0_2 = arith.constant 0 : index
    %3 = vector.load %arg2[%c0, %c0_1, %c0_2] : memref<1x16x256xf32, #tpu.memory_space<vmem>>, vector<1x16x256xf32>
    %4 = vector.shape_cast %3 : vector<1x16x256xf32> to vector<16x256xf32>
    %5 = arith.index_cast %arg1 : i32 to index
    %c0_3 = arith.constant 0 : index
    %c0_4 = arith.constant 0 : index
    %6 = vector.load %arg10[%5, %c0_3, %c0_4] : memref<1x16x256xf32, #tpu.memory_space<vmem>>, vector<1x16x256xf32>
    %7 = vector.shape_cast %6 : vector<1x16x256xf32> to vector<16x256xf32>
    %8 = vector.shape_cast %4 : vector<16x256xf32> to vector<1x16x256xf32>
    tpu.vector_store %arg10[%5, %c0_3, %c0_4], %8 {strides = array<i32>} : memref<1x16x256xf32, #tpu.memory_space<vmem>>, vector<1x16x256xf32>,
    %c0_5 = arith.constant 0 : index
    %c0_6 = arith.constant 0 : index
    %9 = vector.load %arg11[%c0_5, %c0_6] : memref<16x128xf32, #tpu.memory_space<vmem>>, vector<16x128xf32>
    %c0_7 = arith.constant 0 : index
    %c0_8 = arith.constant 0 : index
    %10 = vector.load %arg12[%c0_7, %c0_8] : memref<16x128xf32, #tpu.memory_space<vmem>>, vector<16x128xf32>
    %11 = vector.extract_strided_slice %4 {offsets = [0, 0], sizes = [16, 128], strides = [1, 1]} : vector<16x256xf32> to vector<16x128xf32>
    %12 = arith.addf %9, %11 : vector<16x128xf32>
    %13 = arith.mulf %11, %11 : vector<16x128xf32>
    %14 = arith.addf %10, %13 : vector<16x128xf32>
    %15 = vector.extract_strided_slice %4 {offsets = [0, 128], sizes = [16, 128], strides = [1, 1]} : vector<16x256xf32> to vector<16x128xf32>
    %16 = arith.addf %12, %15 : vector<16x128xf32>
    %17 = arith.mulf %15, %15 : vector<16x128xf32>
    %18 = arith.addf %14, %17 : vector<16x128xf32>
    %c0_9 = arith.constant 0 : index
    %c0_10 = arith.constant 0 : index
    %19 = vector.load %arg11[%c0_9, %c0_10] : memref<16x128xf32, #tpu.memory_space<vmem>>, vector<16x128xf32>
    tpu.vector_store %arg11[%c0_9, %c0_10], %16 {strides = array<i32>} : memref<16x128xf32, #tpu.memory_space<vmem>>, vector<16x128xf32>,
    %c0_11 = arith.constant 0 : index
    %c0_12 = arith.constant 0 : index
    %20 = vector.load %arg12[%c0_11, %c0_12] : memref<16x128xf32, #tpu.memory_space<vmem>>, vector<16x128xf32>
    tpu.vector_store %arg12[%c0_11, %c0_12], %18 {strides = array<i32>} : memref<16x128xf32, #tpu.memory_space<vmem>>, vector<16x128xf32>,
    %c0_i32_13 = arith.constant 0 : i32
    %21 = arith.cmpi eq, %arg1, %c0_i32_13 : i32
    %22 = arith.extui %21 : i1 to i32
    %c0_i32_14 = arith.constant 0 : i32
    %23 = arith.cmpi ne, %22, %c0_i32_14 : i32
    scf.if %23 {
      %c0_15 = arith.constant 0 : index
      %c0_16 = arith.constant 0 : index
      %24 = vector.load %arg11[%c0_15, %c0_16] : memref<16x128xf32, #tpu.memory_space<vmem>>, vector<16x128xf32>
      %cst = arith.constant dense<0.000000e+00> : vector<16xf32>
      %25 = vector.multi_reduction <add>, %24, %cst [1] : vector<16x128xf32> to vector<16xf32>
      %26 = vector.shape_cast %25 : vector<16xf32> to vector<16x1xf32>
      %c0_17 = arith.constant 0 : index
      %c0_18 = arith.constant 0 : index
      %27 = vector.load %arg12[%c0_17, %c0_18] : memref<16x128xf32, #tpu.memory_space<vmem>>, vector<16x128xf32>
      %cst_19 = arith.constant dense<0.000000e+00> : vector<16xf32>
      %28 = vector.multi_reduction <add>, %27, %cst_19 [1] : vector<16x128xf32> to vector<16xf32>
      %29 = vector.shape_cast %28 : vector<16xf32> to vector<16x1xf32>
      %cst_20 = arith.constant 3.906250e-03 : f32
      %30 = vector.broadcast %cst_20 : f32 to vector<16x1xf32>
      %31 = arith.mulf %26, %30 : vector<16x1xf32>
      %cst_21 = arith.constant 2.560000e+02 : f32
      %32 = vector.broadcast %cst_21 : f32 to vector<16x1xf32>
      %33 = arith.mulf %32, %31 : vector<16x1xf32>
      %34 = arith.mulf %33, %31 : vector<16x1xf32>
      %35 = arith.subf %29, %34 : vector<16x1xf32>
      %cst_22 = arith.constant 0.00392156886 : f32
      %36 = vector.broadcast %cst_22 : f32 to vector<16x1xf32>
      %37 = arith.mulf %35, %36 : vector<16x1xf32>
      %cst_23 = arith.constant 0.000000e+00 : f32
      %38 = vector.broadcast %cst_23 : f32 to vector<16x1xf32>
      %39 = arith.maximumf %37, %38 : vector<16x1xf32>
      %cst_24 = arith.constant 9.99999974E-6 : f32
      %40 = vector.broadcast %cst_24 : f32 to vector<16x1xf32>
      %41 = arith.addf %39, %40 : vector<16x1xf32>
      %42 = math.sqrt %41 : vector<16x1xf32>
      %c0_25 = arith.constant 0 : index
      %c0_26 = arith.constant 0 : index
      %43 = vector.load %arg3[%c0_25, %c0_26] : memref<2x16xf32, #tpu.memory_space<vmem>>, vector<2x16xf32>
      %cst_27 = arith.constant dense<0.000000e+00> : vector<2x1xf32>
      %44 = tpu.matmul %43, %31, %cst_27 {dimension_numbers = #tpu.dot_dimension_numbers<[1], [0], [0], [1], [0, 0, 1, 1], [], []>} : vector<2x16xf32>, vector<16x1xf32>, vector<2x1xf32> -> vector<2x1xf32>
      %c0_28 = arith.constant 0 : index
      %c0_29 = arith.constant 0 : index
      %45 = vector.load %arg4[%c0_28, %c0_29] : memref<2x16xf32, #tpu.memory_space<vmem>>, vector<2x16xf32>
      %cst_30 = arith.constant dense<0.000000e+00> : vector<2x1xf32>
      %46 = tpu.matmul %45, %42, %cst_30 {dimension_numbers = #tpu.dot_dimension_numbers<[1], [0], [0], [1], [0, 0, 1, 1], [], []>} : vector<2x16xf32>, vector<16x1xf32>, vector<2x1xf32> -> vector<2x1xf32>
      %47 = arith.addf %44, %46 : vector<2x1xf32>
      %cst_31 = arith.constant 0.000000e+00 : f32
      %48 = vector.broadcast %cst_31 : f32 to vector<2x1xf32>
      %49 = arith.maximumf %47, %48 : vector<2x1xf32>
      %c0_32 = arith.constant 0 : index
      %c0_33 = arith.constant 0 : index
      %50 = vector.load %arg5[%c0_32, %c0_33] : memref<16x2xf32, #tpu.memory_space<vmem>>, vector<16x2xf32>
      %cst_34 = arith.constant dense<0.000000e+00> : vector<16x1xf32>
      %51 = tpu.matmul %50, %49, %cst_34 {dimension_numbers = #tpu.dot_dimension_numbers<[1], [0], [0], [1], [0, 0, 1, 1], [], []>} : vector<16x2xf32>, vector<2x1xf32>, vector<16x1xf32> -> vector<16x1xf32>
      %c0_35 = arith.constant 0 : index
      %c0_36 = arith.constant 0 : index
      %52 = vector.load %arg6[%c0_35, %c0_36] : memref<16x16xf32, #tpu.memory_space<vmem>>, vector<16x16xf32>
      %cst_37 = arith.constant dense<0.000000e+00> : vector<16x1xf32>
      %53 = tpu.matmul %52, %51, %cst_37 {dimension_numbers = #tpu.dot_dimension_numbers<[1], [0], [0], [1], [0, 0, 1, 1], [], []>} : vector<16x16xf32>, vector<16x1xf32>, vector<16x1xf32> -> vector<16x1xf32>
      %c0_38 = arith.constant 0 : index
      %c0_39 = arith.constant 0 : index
      %54 = vector.load %arg7[%c0_38, %c0_39] : memref<16x1xf32, #tpu.memory_space<vmem>>, vector<16x1xf32>
      %55 = arith.addf %53, %54 : vector<16x1xf32>
      %c0_40 = arith.constant 0 : index
      %c0_41 = arith.constant 0 : index
      %56 = vector.load %arg8[%c0_40, %c0_41] : memref<16x16xf32, #tpu.memory_space<vmem>>, vector<16x16xf32>
      %c0_42 = arith.constant 0 : index
      %c0_43 = arith.constant 0 : index
      %c0_44 = arith.constant 0 : index
      %57 = vector.load %arg10[%c0_42, %c0_43, %c0_44] : memref<1x16x256xf32, #tpu.memory_space<vmem>>, vector<1x16x256xf32>
      %58 = vector.shape_cast %57 : vector<1x16x256xf32> to vector<16x256xf32>
      %cst_45 = arith.constant dense<0.000000e+00> : vector<16x256xf32>
      %59 = tpu.matmul %56, %58, %cst_45 {dimension_numbers = #tpu.dot_dimension_numbers<[1], [0], [0], [1], [0, 0, 1, 1], [], []>} : vector<16x16xf32>, vector<16x256xf32>, vector<16x256xf32> -> vector<16x256xf32>
      %60 = vector.broadcast %55 : vector<16x1xf32> to vector<16x256xf32>
      %61 = arith.addf %59, %60 : vector<16x256xf32>
      %c0_46 = arith.constant 0 : index
      %c0_47 = arith.constant 0 : index
      %c0_48 = arith.constant 0 : index
      %62 = vector.load %arg9[%c0_46, %c0_47, %c0_48] : memref<1x16x256xf32, #tpu.memory_space<vmem>>, vector<1x16x256xf32>
      %63 = vector.shape_cast %62 : vector<1x16x256xf32> to vector<16x256xf32>
      %64 = vector.shape_cast %61 : vector<16x256xf32> to vector<1x16x256xf32>
      tpu.vector_store %arg9[%c0_46, %c0_47, %c0_48], %64 {strides = array<i32>} : memref<1x16x256xf32, #tpu.memory_space<vmem>>, vector<1x16x256xf32>,
    } else {
    }
    return
  }
  func.func @transform_0(%arg0: i32, %arg1: i32) -> (i32, i32, i32) {
    %c0_i32 = arith.constant 0 : i32
    %c0_i32_0 = arith.constant 0 : i32
    return %arg0, %c0_i32, %arg1 : i32, i32, i32
  }
  func.func @transform_1(%arg0: i32, %arg1: i32) -> (i32, i32) {
    %c0_i32 = arith.constant 0 : i32
    %c0_i32_0 = arith.constant 0 : i32
    %c0_i32_1 = arith.constant 0 : i32
    return %c0_i32, %c0_i32_0 : i32, i32
  }
  func.func @transform_2(%arg0: i32, %arg1: i32) -> (i32, i32) {
    %c0_i32 = arith.constant 0 : i32
    %c0_i32_0 = arith.constant 0 : i32
    %c0_i32_1 = arith.constant 0 : i32
    return %c0_i32, %c0_i32_0 : i32, i32
  }
  func.func @transform_3(%arg0: i32, %arg1: i32) -> (i32, i32) {
    %c0_i32 = arith.constant 0 : i32
    %c0_i32_0 = arith.constant 0 : i32
    %c0_i32_1 = arith.constant 0 : i32
    return %c0_i32, %c0_i32_0 : i32, i32
  }
  func.func @transform_4(%arg0: i32, %arg1: i32) -> (i32, i32) {
    %c0_i32 = arith.constant 0 : i32
    %c0_i32_0 = arith.constant 0 : i32
    %c0_i32_1 = arith.constant 0 : i32
    return %c0_i32, %c0_i32_0 : i32, i32
  }
  func.func @transform_5(%arg0: i32, %arg1: i32) -> (i32, i32) {
    %c0_i32 = arith.constant 0 : i32
    %c0_i32_0 = arith.constant 0 : i32
    %c0_i32_1 = arith.constant 0 : i32
    return %c0_i32, %c0_i32_0 : i32, i32
  }
  func.func @transform_6(%arg0: i32, %arg1: i32) -> (i32, i32) {
    %c0_i32 = arith.constant 0 : i32
    %c0_i32_0 = arith.constant 0 : i32
    %c0_i32_1 = arith.constant 0 : i32
    return %c0_i32, %c0_i32_0 : i32, i32
  }
  func.func @transform_7(%arg0: i32, %arg1: i32) -> (i32, i32, i32) {
    %c0_i32 = arith.constant 0 : i32
    %c0_i32_0 = arith.constant 0 : i32
    %c0_i32_1 = arith.constant 0 : i32
    return %arg0, %c0_i32, %c0_i32_0 : i32, i32, i32
  }
}

</mosaic_0001>

<llo_original>
// kernel: tpu_custom_call.1
$region0: #{tpu_custom_call.1}
  #allocation0 [shape = 'u32[]', space=smem, size = 0x4, offset = 0x4, fixed_abs, tag = 'smem constant byte address 0x4 - core index']
  #allocation1 [shape = 'u32[144,128]{1,0:T(1,128)}', space=vmem, size = 0x12000, scoped, tag = 'internal scratch']
  #allocation2 [shape = 'f32[1,16,256]{2,1,0:T(8,128)}', space=vmem, size = 0x4000, scoped, tag = 'scratch operand']
  #allocation3 [shape = 'f32[16,128]{1,0:T(8,128)}', space=vmem, size = 0x2000, scoped, tag = 'scratch operand']
  #allocation4 [shape = 'f32[16,128]{1,0:T(8,128)}', space=vmem, size = 0x2000, scoped, tag = 'scratch operand']
  %s0 = inlined_call_operand.hbm [shape: f32[2,16,256], index: 0, kind: input, shape index: {}]
  %s1 = inlined_call_operand.vmem [shape: f32[2,16], index: 1, kind: input, shape index: {}]
  %s2 = inlined_call_operand.vmem [shape: f32[2,16], index: 2, kind: input, shape index: {}]
  %s3 = inlined_call_operand.vmem [shape: f32[16,2], index: 3, kind: input, shape index: {}]
  %s4 = inlined_call_operand.vmem [shape: f32[16,16], index: 4, kind: input, shape index: {}]
  %s5 = inlined_call_operand.vmem [shape: f32[16,1], index: 5, kind: input, shape index: {}]
  %s6 = inlined_call_operand.vmem [shape: f32[16,16], index: 6, kind: input, shape index: {}]
  %s7 = inlined_call_operand.hbm [shape: f32[2,16,256], index: 7, kind: output, shape index: {}]
  %s8 = sld [smem:[#allocation0]]
  $region73: #{tpu_custom_call.1} parent=0
    _
  %s10 = ssub.s32 1, %s8
  %s11 = scalar_select 0, %s10, %s8
  $region1: #{tpu_custom_call.1} parent=0
    #allocation5 [shape = 'u8[32768]{0}', space=vmem, size = 0x8000, scoped, tag = 'input window, operand 0']
    #allocation6 [shape = 's32[2]{0}', space=sflag, size = 0x8, scoped, tag = 'scoped memory for tpu_custom_call.1']
    #allocation7 [shape = 's32[2]{0}', space=sflag, size = 0x8, scoped, tag = 'scoped memory for tpu_custom_call.1']
    #allocation8 [shape = 'u8[32768]{0}', space=vmem, size = 0x8000, scoped, tag = 'output window, operand 0']
    %12 = vsyncpa [#allocation6], 0
    %s13 = scalar_lea.sflag [#allocation6], 1
    %14 = vsyncpa %s13, 0
    %15 = vsyncpa [#allocation7], 0
    %s16 = scalar_lea.sflag [#allocation7], 1
    %17 = vsyncpa %s16, 0
    loop: start=0, step=1, limit=4
    $region2: #{tpu_custom_call.1} parent=1 // loop_pre_header
      _
    $region3: #{tpu_custom_call.1} parent=1 // loop_header
      %s19 = sphi 0, %s23
      %p20 = scmp.ge.s32.totalorder %s19, 4
      %s26 = sphi 0, %s38
      %s27 = sphi 0, %s34
      %s28 = sphi 0, %s26
      %s29 = sphi 0, %s27
      %s30 = sphi 0, %s28
      %s31 = sphi 0, %s29
      %s43 = sphi 0, %s45
      %s46 = sphi 0, %s43
      %s47 = sphi 0, %s46
      %s63 = sphi 0, %s47
      %s67 = sphi 0, %s67
      %s69 = sphi 0, %s67
      %s70 = sphi 0, %s69
      %s84 = sphi 0, %s70
      %s88 = sphi 0, %s88
      %s90 = sphi 0, %s88
      %s91 = sphi 0, %s90
      %s105 = sphi 0, %s91
      %s109 = sphi 0, %s109
      %s111 = sphi 0, %s109
      %s112 = sphi 0, %s111
      %s126 = sphi 0, %s112
      %s130 = sphi 0, %s130
      %s132 = sphi 0, %s130
      %s133 = sphi 0, %s132
      %s147 = sphi 0, %s133
      %s151 = sphi 0, %s151
      %s153 = sphi 0, %s151
      %s154 = sphi 0, %s153
      %s168 = sphi 0, %s154
      %s172 = sphi 0, %s172
      %s174 = sphi 0, %s172
      %s175 = sphi 0, %s174
      %s189 = sphi 0, %s175
      %s195 = sphi 0, %s197
      %s198 = sphi 0, %s195
      %s199 = sphi 0, %s198
      %s215 = sphi 0, %s199
    $region4: #{tpu_custom_call.1} parent=1 // loop_header_branch
      %22 = sbr.rel (%p20) target = $region8
    $region5: #{tpu_custom_call.1} parent=1 // loop_body
      %s24 = ssub.s32 %s19, 1
      %s25 = ssub.s32 %s19, 2
      %s32 = sadd.s32 1, %s27
      %p33 = scmp.ge.s32.totalorder %s32, 1
      %s34 = scalar_select %p33, 0, %s32
      %s35 = sadd.s32 1, %s26
      %s36 = scalar_select %p33, %s35, %s26
      %p37 = scmp.ge.s32.totalorder %s36, 2
      %s38 = scalar_select %p37, 0, %s36
      %s39 = ssub.s32 %s26, %s38
      %s40 = ssub.s32 %s27, %s34
      %s41 = sor.u32 %s39, %s40
      %p42 = scmp.eq.s32.totalorder %s41, 0
      %s44 = sadd.s32 %s43, 1
      %s45 = scalar_select %p42, %s43, %s44
      %p48 = pneg %p42
      %p49 = scmp.eq.s32.totalorder %s19, 1
      %p50 = por %p48, %p49
      %p51 = scmp.ne.s32.totalorder %s43, %s46
      %p52 = scmp.eq.s32.totalorder %s19, 0
      %p53 = por %p51, %p52
      %p54 = scmp.ne.s32.totalorder %s43, %s46
      %p55 = scmp.eq.s32.totalorder %s24, 1
      %p56 = por %p54, %p55
      %p57 = scmp.ne.s32.totalorder %s46, %s47
      %p58 = scmp.eq.s32.totalorder %s24, 0
      %p59 = por %p57, %p58
      %p60 = scmp.ne.s32.totalorder %s46, %s47
      %p61 = scmp.eq.s32.totalorder %s25, 1
      %p62 = por %p60, %p61
      %p64 = scmp.ne.s32.totalorder %s47, %s63
      %p65 = scmp.eq.s32.totalorder %s25, 0
      %p66 = por %p64, %p65
      %s68 = sadd.s32 %s67, 1
      %p71 = scmp.eq.s32.totalorder %s19, 1
      %p72 = scmp.ne.s32.totalorder %s67, %s69
      %p73 = scmp.eq.s32.totalorder %s19, 0
      %p74 = por %p72, %p73
      %p75 = scmp.ne.s32.totalorder %s67, %s69
      %p76 = scmp.eq.s32.totalorder %s24, 1
      %p77 = por %p75, %p76
      %p78 = scmp.ne.s32.totalorder %s69, %s70
      %p79 = scmp.eq.s32.totalorder %s24, 0
      %p80 = por %p78, %p79
      %p81 = scmp.ne.s32.totalorder %s69, %s70
      %p82 = scmp.eq.s32.totalorder %s25, 1
      %p83 = por %p81, %p82
      %p85 = scmp.ne.s32.totalorder %s70, %s84
      %p86 = scmp.eq.s32.totalorder %s25, 0
      %p87 = por %p85, %p86
      %s89 = sadd.s32 %s88, 1
      %p92 = scmp.eq.s32.totalorder %s19, 1
      %p93 = scmp.ne.s32.totalorder %s88, %s90
      %p94 = scmp.eq.s32.totalorder %s19, 0
      %p95 = por %p93, %p94
      %p96 = scmp.ne.s32.totalorder %s88, %s90
      %p97 = scmp.eq.s32.totalorder %s24, 1
      %p98 = por %p96, %p97
      %p99 = scmp.ne.s32.totalorder %s90, %s91
      %p100 = scmp.eq.s32.totalorder %s24, 0
      %p101 = por %p99, %p100
      %p102 = scmp.ne.s32.totalorder %s90, %s91
      %p103 = scmp.eq.s32.totalorder %s25, 1
      %p104 = por %p102, %p103
      %p106 = scmp.ne.s32.totalorder %s91, %s105
      %p107 = scmp.eq.s32.totalorder %s25, 0
      %p108 = por %p106, %p107
      %s110 = sadd.s32 %s109, 1
      %p113 = scmp.eq.s32.totalorder %s19, 1
      %p114 = scmp.ne.s32.totalorder %s109, %s111
      %p115 = scmp.eq.s32.totalorder %s19, 0
      %p116 = por %p114, %p115
      %p117 = scmp.ne.s32.totalorder %s109, %s111
      %p118 = scmp.eq.s32.totalorder %s24, 1
      %p119 = por %p117, %p118
      %p120 = scmp.ne.s32.totalorder %s111, %s112
      %p121 = scmp.eq.s32.totalorder %s24, 0
      %p122 = por %p120, %p121
      %p123 = scmp.ne.s32.totalorder %s111, %s112
      %p124 = scmp.eq.s32.totalorder %s25, 1
      %p125 = por %p123, %p124
      %p127 = scmp.ne.s32.totalorder %s112, %s126
      %p128 = scmp.eq.s32.totalorder %s25, 0
      %p129 = por %p127, %p128
      %s131 = sadd.s32 %s130, 1
      %p134 = scmp.eq.s32.totalorder %s19, 1
      %p135 = scmp.ne.s32.totalorder %s130, %s132
      %p136 = scmp.eq.s32.totalorder %s19, 0
      %p137 = por %p135, %p136
      %p138 = scmp.ne.s32.totalorder %s130, %s132
      %p139 = scmp.eq.s32.totalorder %s24, 1
      %p140 = por %p138, %p139
      %p141 = scmp.ne.s32.totalorder %s132, %s133
      %p142 = scmp.eq.s32.totalorder %s24, 0
      %p143 = por %p141, %p142
      %p144 = scmp.ne.s32.totalorder %s132, %s133
      %p145 = scmp.eq.s32.totalorder %s25, 1
      %p146 = por %p144, %p145
      %p148 = scmp.ne.s32.totalorder %s133, %s147
      %p149 = scmp.eq.s32.totalorder %s25, 0
      %p150 = por %p148, %p149
      %s152 = sadd.s32 %s151, 1
      %p155 = scmp.eq.s32.totalorder %s19, 1
      %p156 = scmp.ne.s32.totalorder %s151, %s153
      %p157 = scmp.eq.s32.totalorder %s19, 0
      %p158 = por %p156, %p157
      %p159 = scmp.ne.s32.totalorder %s151, %s153
      %p160 = scmp.eq.s32.totalorder %s24, 1
      %p161 = por %p159, %p160
      %p162 = scmp.ne.s32.totalorder %s153, %s154
      %p163 = scmp.eq.s32.totalorder %s24, 0
      %p164 = por %p162, %p163
      %p165 = scmp.ne.s32.totalorder %s153, %s154
      %p166 = scmp.eq.s32.totalorder %s25, 1
      %p167 = por %p165, %p166
      %p169 = scmp.ne.s32.totalorder %s154, %s168
      %p170 = scmp.eq.s32.totalorder %s25, 0
      %p171 = por %p169, %p170
      %s173 = sadd.s32 %s172, 1
      %p176 = scmp.eq.s32.totalorder %s19, 1
      %p177 = scmp.ne.s32.totalorder %s172, %s174
      %p178 = scmp.eq.s32.totalorder %s19, 0
      %p179 = por %p177, %p178
      %p180 = scmp.ne.s32.totalorder %s172, %s174
      %p181 = scmp.eq.s32.totalorder %s24, 1
      %p182 = por %p180, %p181
      %p183 = scmp.ne.s32.totalorder %s174, %s175
      %p184 = scmp.eq.s32.totalorder %s24, 0
      %p185 = por %p183, %p184
      %p186 = scmp.ne.s32.totalorder %s174, %s175
      %p187 = scmp.eq.s32.totalorder %s25, 1
      %p188 = por %p186, %p187
      %p190 = scmp.ne.s32.totalorder %s175, %s189
      %p191 = scmp.eq.s32.totalorder %s25, 0
      %p192 = por %p190, %p191
      %s193 = ssub.s32 %s26, %s38
      %p194 = scmp.eq.s32.totalorder %s193, 0
      %s196 = sadd.s32 %s195, 1
      %s197 = scalar_select %p194, %s195, %s196
      %p200 = pneg %p194
      %p201 = scmp.eq.s32.totalorder %s19, 1
      %p202 = por %p200, %p201
      %p203 = scmp.ne.s32.totalorder %s195, %s198
      %p204 = scmp.eq.s32.totalorder %s19, 0
      %p205 = por %p203, %p204
      %p206 = scmp.ne.s32.totalorder %s195, %s198
      %p207 = scmp.eq.s32.totalorder %s24, 1
      %p208 = por %p206, %p207
      %p209 = scmp.ne.s32.totalorder %s198, %s199
      %p210 = scmp.eq.s32.totalorder %s24, 0
      %p211 = por %p209, %p210
      %p212 = scmp.ne.s32.totalorder %s198, %s199
      %p213 = scmp.eq.s32.totalorder %s25, 1
      %p214 = por %p212, %p213
      %p216 = scmp.ne.s32.totalorder %s199, %s215
      %p217 = scmp.eq.s32.totalorder %s25, 0
      %p218 = por %p216, %p217
      %p219 = scmp.le.s32.totalorder 1, %s19
      %p220 = scmp.lt.s32.totalorder %s19, 3
      %p221 = pnand %p219, %p220
      %p222 = pneg %p221
      // Predicated region
      $region9: #{tpu_custom_call.1} parent=5 // pred_check
        _
      $region10: #{tpu_custom_call.1} parent=5 // pred_check_branch
        %224 = sbr.rel (%p221) target = $region12
      $region11: #{tpu_custom_call.1} parent=5 // pred_region
        %s225 = ssub.s32 %s19, 1
        // Predicated region
        $region13: #{tpu_custom_call.1} parent=11 // pred_check
          %p226 = pneg %p80
        $region14: #{tpu_custom_call.1} parent=11 // pred_check_branch
          %228 = sbr.rel (%p226) target = $region16
        $region15: #{tpu_custom_call.1} parent=11 // pred_region
          _
        $region16: #{tpu_custom_call.1} parent=11 // pred_fallthru
          _
        // Predicated region
        $region17: #{tpu_custom_call.1} parent=11 // pred_check
          %p229 = pneg %p101
        $region18: #{tpu_custom_call.1} parent=11 // pred_check_branch
          %231 = sbr.rel (%p229) target = $region20
        $region19: #{tpu_custom_call.1} parent=11 // pred_region
          _
        $region20: #{tpu_custom_call.1} parent=11 // pred_fallthru
          _
        // Predicated region
        $region21: #{tpu_custom_call.1} parent=11 // pred_check
          %p232 = pneg %p122
        $region22: #{tpu_custom_call.1} parent=11 // pred_check_branch
          %234 = sbr.rel (%p232) target = $region24
        $region23: #{tpu_custom_call.1} parent=11 // pred_region
          _
        $region24: #{tpu_custom_call.1} parent=11 // pred_fallthru
          _
        // Predicated region
        $region25: #{tpu_custom_call.1} parent=11 // pred_check
          %p235 = pneg %p143
        $region26: #{tpu_custom_call.1} parent=11 // pred_check_branch
          %237 = sbr.rel (%p235) target = $region28
        $region27: #{tpu_custom_call.1} parent=11 // pred_region
          _
        $region28: #{tpu_custom_call.1} parent=11 // pred_fallthru
          _
        // Predicated region
        $region29: #{tpu_custom_call.1} parent=11 // pred_check
          %p238 = pneg %p164
        $region30: #{tpu_custom_call.1} parent=11 // pred_check_branch
          %240 = sbr.rel (%p238) target = $region32
        $region31: #{tpu_custom_call.1} parent=11 // pred_region
          _
        $region32: #{tpu_custom_call.1} parent=11 // pred_fallthru
          _
        // Predicated region
        $region33: #{tpu_custom_call.1} parent=11 // pred_check
          %p241 = pneg %p185
        $region34: #{tpu_custom_call.1} parent=11 // pred_check_branch
          %243 = sbr.rel (%p241) target = $region36
        $region35: #{tpu_custom_call.1} parent=11 // pred_region
          _
        $region36: #{tpu_custom_call.1} parent=11 // pred_fallthru
          _
      $region12: #{tpu_custom_call.1} parent=5 // pred_fallthru
        _
      %p244 = scmp.lt.s32.totalorder %s19, 2
      // Predicated region
      $region37: #{tpu_custom_call.1} parent=5 // pred_check
        %p245 = pneg %p244
      $region38: #{tpu_custom_call.1} parent=5 // pred_check_branch
        %247 = sbr.rel (%p245) target = $region40
      $region39: #{tpu_custom_call.1} parent=5 // pred_region
        // Predicated region
        $region41: #{tpu_custom_call.1} parent=39 // pred_check
          %p248 = pneg %p53
        $region42: #{tpu_custom_call.1} parent=39 // pred_check_branch
          %250 = sbr.rel (%p248) target = $region44
        $region43: #{tpu_custom_call.1} parent=39 // pred_region
          %s251 = sand.u32 %s43, 1
          %s252 = scalar_lea.sflag [#allocation6], %s251
          %s253 = sand.u32 %s43, 1
          %s254 = smul.addr %s253, 32
          %s255 = scalar_lea.vmem [#allocation5], %s254
          %s256 = smul.u32 2, %s27
          %s258 = ssub.s32 512, 512
          %259 = vsyncadd %s252, %s258
          %s260 = smul.addr %s26, 4
          %s261 = sadd.s32 %s256, %s260
          %s262 = smul.addr %s261, 128
          %s263 = scalar_lea.hbm %s0, %s262
          %s264 = sshll.u32 %s255, 4
          %s265 = int_to_ptr.vmem [resolvable:$true] %s264
          %270 = dma.hbm_to_vmem [thread:$0]  %s263, 512, %s265, %s252, 256, 256, 16
        $region44: #{tpu_custom_call.1} parent=39 // pred_fallthru
          _
      $region40: #{tpu_custom_call.1} parent=5 // pred_fallthru
        _
      %p271 = scmp.le.s32.totalorder 1, %s19
      %p272 = scmp.lt.s32.totalorder %s19, 3
      %p273 = pnand %p271, %p272
      %p274 = pneg %p273
      // Predicated region
      $region45: #{tpu_custom_call.1} parent=5 // pred_check
        _
      $region46: #{tpu_custom_call.1} parent=5 // pred_check_branch
        %276 = sbr.rel (%p273) target = $region48
      $region47: #{tpu_custom_call.1} parent=5 // pred_region
        %s277 = ssub.s32 %s19, 1
        %s278 = sand.u32 %s46, 1
        %s279 = scalar_lea.sflag [#allocation6], %s278
        %s280 = sand.u32 %s46, 1
        %s281 = smul.addr %s280, 32
        %s282 = scalar_lea.vmem [#allocation5], %s281
        // Predicated region
        $region49: #{tpu_custom_call.1} parent=47 // pred_check
          %p283 = pneg %p59
        $region50: #{tpu_custom_call.1} parent=47 // pred_check_branch
          %285 = sbr.rel (%p283) target = $region52
        $region51: #{tpu_custom_call.1} parent=47 // pred_region
          %286 = dma.done %s279, 512
        $region52: #{tpu_custom_call.1} parent=47 // pred_fallthru
          _
        %s287 = sand.u32 %s46, 1
        %s288 = scalar_lea.sflag [#allocation6], %s287
        %s289 = sand.u32 %s46, 1
        %s290 = smul.addr %s289, 32
        %s291 = scalar_lea.vmem [#allocation5], %s290
        %p292 = pneg %p59
        %p293 = pneg %p56
        %p294 = pneg %p80
        %p295 = pneg %p77
        %p296 = pneg %p101
        %p297 = pneg %p98
        %p298 = pneg %p122
        %p299 = pneg %p119
        %p300 = pneg %p143
        %p301 = pneg %p140
        %p302 = pneg %p164
        %p303 = pneg %p161
        %p304 = pneg %p185
        %p305 = pneg %p182
        %p306 = pneg %p211
        %p307 = pneg %p208
        %s308 = sand.u32 %s198, 1
        %s309 = scalar_lea.sflag [#allocation7], %s308
        %s310 = sand.u32 %s198, 1
        %s311 = smul.addr %s310, 32
        %s312 = scalar_lea.vmem [#allocation8], %s311
        %s313 = smul.u32 2, %s29
        %p314 = scmp.eq.s32.totalorder %s29, 0
        // Predicated region
        $region53: #{tpu_custom_call.1} parent=47 // pred_check
          %p315 = pneg %p314
        $region54: #{tpu_custom_call.1} parent=47 // pred_check_branch
          %317 = sbr.rel (%p315) target = $region56
        $region55: #{tpu_custom_call.1} parent=47 // pred_region
          %318 = vst [vmem:[#allocation3] sm:$0xff] 0.0
          %319 = vst [vmem:[#allocation3 + $0x8] sm:$0xff] 0.0
          %320 = vst [vmem:[#allocation4] sm:$0xff] 0.0
          %321 = vst [vmem:[#allocation4 + $0x8] sm:$0xff] 0.0
        $region56: #{tpu_custom_call.1} parent=47 // pred_fallthru
          _
        %v322 = vld [vmem:[%s282] sm:$0xff]
        %v323 = vld [vmem:[%s282 + $0x8] sm:$0xff]
        %v324 = vld [vmem:[%s282 + $0x10] sm:$0xff]
        %v325 = vld [vmem:[%s282 + $0x18] sm:$0xff]
        %s326 = smul.u32 %s29, 4
        %s327 = smul.addr %s326, 8
        %s328 = scalar_lea.vmem [#allocation2], %s327
        %329 = vst [vmem:[%s328] sm:$0xff] %v322
        %330 = vst [vmem:[%s328 + $0x8] sm:$0xff] %v323
        %331 = vst [vmem:[%s328 + $0x10] sm:$0xff] %v324
        %332 = vst [vmem:[%s328 + $0x18] sm:$0xff] %v325
        %v333 = vld [vmem:[#allocation3] sm:$0xff]
        %v334 = vld [vmem:[#allocation3 + $0x8] sm:$0xff]
        %v335 = vld [vmem:[#allocation4] sm:$0xff]
        %v336 = vld [vmem:[#allocation4 + $0x8] sm:$0xff]
        %v337 = vadd.f32 %v333, %v322
        %v338 = vadd.f32 %v334, %v324
        %v339 = vmul.f32 %v322, %v322
        %v340 = vmul.f32 %v324, %v324
        %v341 = vadd.f32 %v335, %v339
        %v342 = vadd.f32 %v336, %v340
        %v343 = vadd.f32 %v337, %v323
        %v344 = vadd.f32 %v338, %v325
        %v345 = vmul.f32 %v323, %v323
        %v346 = vmul.f32 %v325, %v325
        %v347 = vadd.f32 %v341, %v345
        %v348 = vadd.f32 %v342, %v346
        %349 = vst [vmem:[#allocation3] sm:$0xff] %v343
        %350 = vst [vmem:[#allocation3 + $0x8] sm:$0xff] %v344
        %351 = vst [vmem:[#allocation4] sm:$0xff] %v347
        %352 = vst [vmem:[#allocation4 + $0x8] sm:$0xff] %v348
        // Predicated region
        $region57: #{tpu_custom_call.1} parent=47 // pred_check
          %p353 = pneg %p314
        $region58: #{tpu_custom_call.1} parent=47 // pred_check_branch
          %355 = sbr.rel (%p353) target = $region60
        $region59: #{tpu_custom_call.1} parent=47 // pred_region
          %v356 = vld [vmem:[#allocation3] sm:$0xff]
          %v357 = vld [vmem:[#allocation3 + $0x8] sm:$0xff]
          %358 = vadd.xlane.f32.xlu0 %v356
          %v359 = vpop.xlane.xlu0 %358
          %360 = vadd.xlane.f32.xlu0 %v357
          %v361 = vpop.xlane.xlu0 %360
          %v362 = vld [vmem:[#allocation4] sm:$0xff]
          %v363 = vld [vmem:[#allocation4 + $0x8] sm:$0xff]
          %364 = vadd.xlane.f32.xlu0 %v362
          %v365 = vpop.xlane.xlu0 %364
          %366 = vadd.xlane.f32.xlu0 %v363
          %v367 = vpop.xlane.xlu0 %366
          %v368 = vmul.f32 %v359, 0.00390625
          %v369 = vmul.f32 %v361, 0.00390625
          %v370 = vmul.f32 %v368, 256.0
          %v371 = vmul.f32 %v369, 256.0
          %v372 = vmul.f32 %v370, %v368
          %v373 = vmul.f32 %v371, %v369
          %v374 = vsub.f32 %v365, %v372
          %v375 = vsub.f32 %v367, %v373
          %v376 = vmul.f32 %v374, 0.003921569
          %v377 = vmul.f32 %v375, 0.003921569
          %v378 = vmax.f32 %v376, 0.0
          %v379 = vmax.f32 %v377, 0.0
          %v380 = vadd.f32 %v378, 1e-05
          %v381 = vadd.f32 %v379, 1e-05
          %v382 = vrsqrt.pop %v380
          %v383 = vmul.f32 %v380, %v382
          %vm384 = vcmp.eq.f32.partialorder %v380, inf
          %v385 = vsel %vm384, %v380, %v383
          %vm386 = vcmp.eq.f32.partialorder %v380, 0.0
          %v387 = vand.u32 %v380, 2147483648
          %v388 = vsel %vm386, %v387, %v385
          %v389 = vrsqrt.pop %v381
          %v390 = vmul.f32 %v381, %v389
          %vm391 = vcmp.eq.f32.partialorder %v381, inf
          %v392 = vsel %vm391, %v381, %v390
          %vm393 = vcmp.eq.f32.partialorder %v381, 0.0
          %v394 = vand.u32 %v381, 2147483648
          %v395 = vsel %vm393, %v394, %v392
          %v396 = vld [vmem:[%s1] sm:$0x3]
          %v397 = vld [vmem:[%s2] sm:$0x3]
          %vm398 = vcmask 130048
          %v400 = vsel %vm398, %v397, 0
          %402 = vmatprep.subr.mxu0 0.0
          %403 = vmatpush1.msra.mxu0 0.0
          %404 = vmatprep.subr.mxu0 0.0
          %405 = vmatpush1.msra.mxu0 0.0
          %406 = vmatprep.subr.mxu0 0.0
          %407 = vmatpush1.msra.mxu0 0.0
          %408 = vmatprep.subr.mxu0 0.0
          %409 = vmatpush1.msra.mxu0 0.0
          %410 = vmatprep.subr.mxu0 0.0
          %411 = vmatpush1.msra.mxu0 0.0
          %412 = vmatprep.subr.mxu0 0.0
          %413 = vmatpush1.msra.mxu0 0.0
          %414 = vmatprep.subr.mxu0 0.0
          %415 = vmatpush1.msra.mxu0 0.0
          %416 = vmatprep.subr.mxu0 0.0
          %417 = vmatpush1.msra.mxu0 0.0
          %418 = vmatprep.subr.mxu0 0.0
          %419 = vmatpush1.msra.mxu0 0.0
          %420 = vmatprep.subr.mxu0 0.0
          %421 = vmatpush1.msra.mxu0 0.0
          %422 = vmatprep.subr.mxu0 0.0
          %423 = vmatpush1.msra.mxu0 0.0
          %424 = vmatprep.subr.mxu0 0.0
          %425 = vmatpush1.msra.mxu0 0.0
          %426 = vmatprep.subr.mxu0 0.0
          %427 = vmatpush1.msra.mxu0 0.0
          %428 = vmatprep.subr.mxu0 0.0
          %429 = vmatpush1.msra.mxu0 0.0
          %430 = vmatprep.subr.mxu0 0.0
          %431 = vmatpush1.msra.mxu0 %v395
          %432 = vmatprep.subr.mxu0 0.0
          %433 = vmatpush1.msra.mxu0 %v388
          %434 = vmatprep.subr.mxu0 0.0
          %435 = vmatpush2.msra.mxu0 0.0
          %436 = vmatprep.subr.mxu0 0.0
          %437 = vmatpush2.msra.mxu0 0.0
          %438 = vmatprep.subr.mxu0 0.0
          %439 = vmatpush2.msra.mxu0 0.0
          %440 = vmatprep.subr.mxu0 0.0
          %441 = vmatpush2.msra.mxu0 0.0
          %442 = vmatprep.subr.mxu0 0.0
          %443 = vmatpush2.msra.mxu0 0.0
          %444 = vmatprep.subr.mxu0 0.0
          %445 = vmatpush2.msra.mxu0 0.0
          %446 = vmatprep.subr.mxu0 0.0
          %447 = vmatpush2.msra.mxu0 0.0
          %448 = vmatprep.subr.mxu0 0.0
          %449 = vmatpush2.msra.mxu0 0.0
          %450 = vmatprep.subr.mxu0 0.0
          %451 = vmatpush2.msra.mxu0 0.0
          %452 = vmatprep.subr.mxu0 0.0
          %453 = vmatpush2.msra.mxu0 0.0
          %454 = vmatprep.subr.mxu0 0.0
          %455 = vmatpush2.msra.mxu0 0.0
          %456 = vmatprep.subr.mxu0 0.0
          %457 = vmatpush2.msra.mxu0 0.0
          %458 = vmatprep.subr.mxu0 0.0
          %459 = vmatpush2.msra.mxu0 0.0
          %460 = vmatprep.subr.mxu0 0.0
          %461 = vmatpush2.msra.mxu0 0.0
          %462 = vmatprep.subr.mxu0 0.0
          %463 = vmatpush2.msra.mxu0 0.0
          %464 = vmatprep.subr.mxu0 0.0
          %465 = vmatpush2.msra.mxu0 0.0
          %466 = vmatprep.mubr.f32.mxu0 0.0
          %467 = vmatmul.mubr.f32.gmra.mxu0 %v400
          %v468 = vpop.f32.mrf.mxu0
          %v469 = vadd.f32 0.0, %v468
          %v470 = vpop.f32.mrf.mxu0
          %471 = vdwg.mxu0
          %v473 = vsel %vm398, %v396, 0
          %475 = vmatprep.subr.mxu0 0.0
          %476 = vmatpush1.msra.mxu0 0.0
          %477 = vmatprep.subr.mxu0 0.0
          %478 = vmatpush1.msra.mxu0 0.0
          %479 = vmatprep.subr.mxu0 0.0
          %480 = vmatpush1.msra.mxu0 0.0
          %481 = vmatprep.subr.mxu0 0.0
          %482 = vmatpush1.msra.mxu0 0.0
          %483 = vmatprep.subr.mxu0 0.0
          %484 = vmatpush1.msra.mxu0 0.0
          %485 = vmatprep.subr.mxu0 0.0
          %486 = vmatpush1.msra.mxu0 0.0
          %487 = vmatprep.subr.mxu0 0.0
          %488 = vmatpush1.msra.mxu0 0.0
          %489 = vmatprep.subr.mxu0 0.0
          %490 = vmatpush1.msra.mxu0 0.0
          %491 = vmatprep.subr.mxu0 0.0
          %492 = vmatpush1.msra.mxu0 0.0
          %493 = vmatprep.subr.mxu0 0.0
          %494 = vmatpush1.msra.mxu0 0.0
          %495 = vmatprep.subr.mxu0 0.0
          %496 = vmatpush1.msra.mxu0 0.0
          %497 = vmatprep.subr.mxu0 0.0
          %498 = vmatpush1.msra.mxu0 0.0
          %499 = vmatprep.subr.mxu0 0.0
          %500 = vmatpush1.msra.mxu0 0.0
          %501 = vmatprep.subr.mxu0 0.0
          %502 = vmatpush1.msra.mxu0 0.0
          %503 = vmatprep.subr.mxu0 0.0
          %504 = vmatpush1.msra.mxu0 %v369
          %505 = vmatprep.subr.mxu0 0.0
          %506 = vmatpush1.msra.mxu0 %v368
          %507 = vmatprep.subr.mxu0 0.0
          %508 = vmatpush2.msra.mxu0 0.0
          %509 = vmatprep.subr.mxu0 0.0
          %510 = vmatpush2.msra.mxu0 0.0
          %511 = vmatprep.subr.mxu0 0.0
          %512 = vmatpush2.msra.mxu0 0.0
          %513 = vmatprep.subr.mxu0 0.0
          %514 = vmatpush2.msra.mxu0 0.0
          %515 = vmatprep.subr.mxu0 0.0
          %516 = vmatpush2.msra.mxu0 0.0
          %517 = vmatprep.subr.mxu0 0.0
          %518 = vmatpush2.msra.mxu0 0.0
          %519 = vmatprep.subr.mxu0 0.0
          %520 = vmatpush2.msra.mxu0 0.0
          %521 = vmatprep.subr.mxu0 0.0
          %522 = vmatpush2.msra.mxu0 0.0
          %523 = vmatprep.subr.mxu0 0.0
          %524 = vmatpush2.msra.mxu0 0.0
          %525 = vmatprep.subr.mxu0 0.0
          %526 = vmatpush2.msra.mxu0 0.0
          %527 = vmatprep.subr.mxu0 0.0
          %528 = vmatpush2.msra.mxu0 0.0
          %529 = vmatprep.subr.mxu0 0.0
          %530 = vmatpush2.msra.mxu0 0.0
          %531 = vmatprep.subr.mxu0 0.0
          %532 = vmatpush2.msra.mxu0 0.0
          %533 = vmatprep.subr.mxu0 0.0
          %534 = vmatpush2.msra.mxu0 0.0
          %535 = vmatprep.subr.mxu0 0.0
          %536 = vmatpush2.msra.mxu0 0.0
          %537 = vmatprep.subr.mxu0 0.0
          %538 = vmatpush2.msra.mxu0 0.0
          %539 = vmatprep.mubr.f32.mxu0 0.0
          %540 = vmatmul.mubr.f32.gmra.mxu0 %v473
          %v541 = vpop.f32.mrf.mxu0
          %v542 = vadd.f32 %v469, %v541
          %v543 = vpop.f32.mrf.mxu0
          %544 = vdwg.mxu0
          %v545 = vmax.f32 %v542, 0.0
          %v546 = vld [vmem:[%s3] sm:$0xff]
          %v547 = vld [vmem:[%s3 + $0x8] sm:$0xff]
          %vm548 = vcmask 15360
          %v550 = vsel %vm548, %v546, 0
          %v553 = vsel %vm548, %v547, 0
          %vm555 = vcmask 1041408
          %v557 = vsel %vm555, %v545, 0
          %559 = vmatprep.subr.mxu0 0.0
          %560 = vmatpush1.msra.mxu0 0.0
          %561 = vmatprep.subr.mxu0 0.0
          %562 = vmatpush1.msra.mxu0 0.0
          %563 = vmatprep.subr.mxu0 0.0
          %564 = vmatpush1.msra.mxu0 0.0
          %565 = vmatprep.subr.mxu0 0.0
          %566 = vmatpush1.msra.mxu0 0.0
          %567 = vmatprep.subr.mxu0 0.0
          %568 = vmatpush1.msra.mxu0 0.0
          %569 = vmatprep.subr.mxu0 0.0
          %570 = vmatpush1.msra.mxu0 0.0
          %571 = vmatprep.subr.mxu0 0.0
          %572 = vmatpush1.msra.mxu0 0.0
          %573 = vmatprep.subr.mxu0 0.0
          %574 = vmatpush1.msra.mxu0 0.0
          %575 = vmatprep.subr.mxu0 0.0
          %576 = vmatpush1.msra.mxu0 0.0
          %577 = vmatprep.subr.mxu0 0.0
          %578 = vmatpush1.msra.mxu0 0.0
          %579 = vmatprep.subr.mxu0 0.0
          %580 = vmatpush1.msra.mxu0 0.0
          %581 = vmatprep.subr.mxu0 0.0
          %582 = vmatpush1.msra.mxu0 0.0
          %583 = vmatprep.subr.mxu0 0.0
          %584 = vmatpush1.msra.mxu0 0.0
          %585 = vmatprep.subr.mxu0 0.0
          %586 = vmatpush1.msra.mxu0 0.0
          %587 = vmatprep.subr.mxu0 0.0
          %588 = vmatpush1.msra.mxu0 0.0
          %589 = vmatprep.subr.mxu0 0.0
          %590 = vmatpush1.msra.mxu0 %v557
          %591 = vmatprep.subr.mxu0 0.0
          %592 = vmatpush2.msra.mxu0 0.0
          %593 = vmatprep.subr.mxu0 0.0
          %594 = vmatpush2.msra.mxu0 0.0
          %595 = vmatprep.subr.mxu0 0.0
          %596 = vmatpush2.msra.mxu0 0.0
          %597 = vmatprep.subr.mxu0 0.0
          %598 = vmatpush2.msra.mxu0 0.0
          %599 = vmatprep.subr.mxu0 0.0
          %600 = vmatpush2.msra.mxu0 0.0
          %601 = vmatprep.subr.mxu0 0.0
          %602 = vmatpush2.msra.mxu0 0.0
          %603 = vmatprep.subr.mxu0 0.0
          %604 = vmatpush2.msra.mxu0 0.0
          %605 = vmatprep.subr.mxu0 0.0
          %606 = vmatpush2.msra.mxu0 0.0
          %607 = vmatprep.subr.mxu0 0.0
          %608 = vmatpush2.msra.mxu0 0.0
          %609 = vmatprep.subr.mxu0 0.0
          %610 = vmatpush2.msra.mxu0 0.0
          %611 = vmatprep.subr.mxu0 0.0
          %612 = vmatpush2.msra.mxu0 0.0
          %613 = vmatprep.subr.mxu0 0.0
          %614 = vmatpush2.msra.mxu0 0.0
          %615 = vmatprep.subr.mxu0 0.0
          %616 = vmatpush2.msra.mxu0 0.0
          %617 = vmatprep.subr.mxu0 0.0
          %618 = vmatpush2.msra.mxu0 0.0
          %619 = vmatprep.subr.mxu0 0.0
          %620 = vmatpush2.msra.mxu0 0.0
          %621 = vmatprep.subr.mxu0 0.0
          %622 = vmatpush2.msra.mxu0 0.0
          %623 = vmatprep.mubr.f32.mxu0 0.0
          %624 = vmatmul.mubr.f32.gmra.mxu0 %v550
          %v625 = vpop.f32.mrf.mxu0
          %v626 = vadd.f32 0.0, %v625
          %v627 = vpop.f32.mrf.mxu0
          %628 = vmatprep.mubr.f32.mxu0 0.0
          %629 = vmatmul.mubr.f32.gmra.mxu0 %v553
          %v630 = vpop.f32.mrf.mxu0
          %v631 = vadd.f32 0.0, %v630
          %v632 = vpop.f32.mrf.mxu0
          %633 = vdwg.mxu0
          %v634 = vld [vmem:[%s4] sm:$0xff]
          %v635 = vld [vmem:[%s4 + $0x8] sm:$0xff]
          %v636 = vld [vmem:[%s5] sm:$0xff]
          %v637 = vld [vmem:[%s5 + $0x8] sm:$0xff]
          %v639 = vsel %vm398, %v634, 0
          %v642 = vsel %vm398, %v635, 0
          %644 = vmatprep.subr.mxu0 0.0
          %645 = vmatpush1.msra.mxu0 0.0
          %646 = vmatprep.subr.mxu0 0.0
          %647 = vmatpush1.msra.mxu0 0.0
          %648 = vmatprep.subr.mxu0 0.0
          %649 = vmatpush1.msra.mxu0 0.0
          %650 = vmatprep.subr.mxu0 0.0
          %651 = vmatpush1.msra.mxu0 0.0
          %652 = vmatprep.subr.mxu0 0.0
          %653 = vmatpush1.msra.mxu0 0.0
          %654 = vmatprep.subr.mxu0 0.0
          %655 = vmatpush1.msra.mxu0 0.0
          %656 = vmatprep.subr.mxu0 0.0
          %657 = vmatpush1.msra.mxu0 0.0
          %658 = vmatprep.subr.mxu0 0.0
          %659 = vmatpush1.msra.mxu0 0.0
          %660 = vmatprep.subr.mxu0 0.0
          %661 = vmatpush1.msra.mxu0 0.0
          %662 = vmatprep.subr.mxu0 0.0
          %663 = vmatpush1.msra.mxu0 0.0
          %664 = vmatprep.subr.mxu0 0.0
          %665 = vmatpush1.msra.mxu0 0.0
          %666 = vmatprep.subr.mxu0 0.0
          %667 = vmatpush1.msra.mxu0 0.0
          %668 = vmatprep.subr.mxu0 0.0
          %669 = vmatpush1.msra.mxu0 0.0
          %670 = vmatprep.subr.mxu0 0.0
          %671 = vmatpush1.msra.mxu0 0.0
          %672 = vmatprep.subr.mxu0 0.0
          %673 = vmatpush1.msra.mxu0 %v631
          %674 = vmatprep.subr.mxu0 0.0
          %675 = vmatpush1.msra.mxu0 %v626
          %676 = vmatprep.subr.mxu0 0.0
          %677 = vmatpush2.msra.mxu0 0.0
          %678 = vmatprep.subr.mxu0 0.0
          %679 = vmatpush2.msra.mxu0 0.0
          %680 = vmatprep.subr.mxu0 0.0
          %681 = vmatpush2.msra.mxu0 0.0
          %682 = vmatprep.subr.mxu0 0.0
          %683 = vmatpush2.msra.mxu0 0.0
          %684 = vmatprep.subr.mxu0 0.0
          %685 = vmatpush2.msra.mxu0 0.0
          %686 = vmatprep.subr.mxu0 0.0
          %687 = vmatpush2.msra.mxu0 0.0
          %688 = vmatprep.subr.mxu0 0.0
          %689 = vmatpush2.msra.mxu0 0.0
          %690 = vmatprep.subr.mxu0 0.0
          %691 = vmatpush2.msra.mxu0 0.0
          %692 = vmatprep.subr.mxu0 0.0
          %693 = vmatpush2.msra.mxu0 0.0
          %694 = vmatprep.subr.mxu0 0.0
          %695 = vmatpush2.msra.mxu0 0.0
          %696 = vmatprep.subr.mxu0 0.0
          %697 = vmatpush2.msra.mxu0 0.0
          %698 = vmatprep.subr.mxu0 0.0
          %699 = vmatpush2.msra.mxu0 0.0
          %700 = vmatprep.subr.mxu0 0.0
          %701 = vmatpush2.msra.mxu0 0.0
          %702 = vmatprep.subr.mxu0 0.0
          %703 = vmatpush2.msra.mxu0 0.0
          %704 = vmatprep.subr.mxu0 0.0
          %705 = vmatpush2.msra.mxu0 0.0
          %706 = vmatprep.subr.mxu0 0.0
          %707 = vmatpush2.msra.mxu0 0.0
          %708 = vmatprep.mubr.f32.mxu0 0.0
          %709 = vmatmul.mubr.f32.gmra.mxu0 %v639
          %v710 = vpop.f32.mrf.mxu0
          %v711 = vadd.f32 %v636, %v710
          %v712 = vpop.f32.mrf.mxu0
          %713 = vmatprep.mubr.f32.mxu0 0.0
          %714 = vmatmul.mubr.f32.gmra.mxu0 %v642
          %v715 = vpop.f32.mrf.mxu0
          %v716 = vadd.f32 %v637, %v715
          %v717 = vpop.f32.mrf.mxu0
          %718 = vdwg.mxu0
          %v719 = vld [vmem:[%s6] sm:$0xff]
          %v720 = vld [vmem:[%s6 + $0x8] sm:$0xff]
          %v721 = vld [vmem:[#allocation2] sm:$0xff]
          %v722 = vld [vmem:[#allocation2 + $0x8] sm:$0xff]
          %v723 = vld [vmem:[#allocation2 + $0x10] sm:$0xff]
          %v724 = vld [vmem:[#allocation2 + $0x18] sm:$0xff]
          %726 = vset.pattern.permute.xlu0 0
          %727 = vperm.xlu0 %726, %v711
          %v728 = vpop.permute.xlu0 %727
          %731 = vset.pattern.permute.xlu0 0
          %732 = vperm.xlu0 %731, %v716
          %v733 = vpop.permute.xlu0 %732
          %v736 = vsel %vm398, %v719, 0
          %v739 = vsel %vm398, %v720, 0
          %741 = vmatprep.subr.mxu0 0.0
          %742 = vmatpush1.msra.mxu0 0.0
          %743 = vmatprep.subr.mxu0 0.0
          %744 = vmatpush1.msra.mxu0 0.0
          %745 = vmatprep.subr.mxu0 0.0
          %746 = vmatpush1.msra.mxu0 0.0
          %747 = vmatprep.subr.mxu0 0.0
          %748 = vmatpush1.msra.mxu0 0.0
          %749 = vmatprep.subr.mxu0 0.0
          %750 = vmatpush1.msra.mxu0 0.0
          %751 = vmatprep.subr.mxu0 0.0
          %752 = vmatpush1.msra.mxu0 0.0
          %753 = vmatprep.subr.mxu0 0.0
          %754 = vmatpush1.msra.mxu0 0.0
          %755 = vmatprep.subr.mxu0 0.0
          %756 = vmatpush1.msra.mxu0 0.0
          %757 = vmatprep.subr.mxu0 0.0
          %758 = vmatpush1.msra.mxu0 0.0
          %759 = vmatprep.subr.mxu0 0.0
          %760 = vmatpush1.msra.mxu0 0.0
          %761 = vmatprep.subr.mxu0 0.0
          %762 = vmatpush1.msra.mxu0 0.0
          %763 = vmatprep.subr.mxu0 0.0
          %764 = vmatpush1.msra.mxu0 0.0
          %765 = vmatprep.subr.mxu0 0.0
          %766 = vmatpush1.msra.mxu0 0.0
          %767 = vmatprep.subr.mxu0 0.0
          %768 = vmatpush1.msra.mxu0 0.0
          %769 = vmatprep.subr.mxu0 %v724
          %770 = vmatpush1.msra.mxu0 %v723
          %771 = vmatprep.subr.mxu0 %v722
          %772 = vmatpush1.msra.mxu0 %v721
          %773 = vmatprep.subr.mxu0 0.0
          %774 = vmatpush2.msra.mxu0 0.0
          %775 = vmatprep.subr.mxu0 0.0
          %776 = vmatpush2.msra.mxu0 0.0
          %777 = vmatprep.subr.mxu0 0.0
          %778 = vmatpush2.msra.mxu0 0.0
          %779 = vmatprep.subr.mxu0 0.0
          %780 = vmatpush2.msra.mxu0 0.0
          %781 = vmatprep.subr.mxu0 0.0
          %782 = vmatpush2.msra.mxu0 0.0
          %783 = vmatprep.subr.mxu0 0.0
          %784 = vmatpush2.msra.mxu0 0.0
          %785 = vmatprep.subr.mxu0 0.0
          %786 = vmatpush2.msra.mxu0 0.0
          %787 = vmatprep.subr.mxu0 0.0
          %788 = vmatpush2.msra.mxu0 0.0
          %789 = vmatprep.subr.mxu0 0.0
          %790 = vmatpush2.msra.mxu0 0.0
          %791 = vmatprep.subr.mxu0 0.0
          %792 = vmatpush2.msra.mxu0 0.0
          %793 = vmatprep.subr.mxu0 0.0
          %794 = vmatpush2.msra.mxu0 0.0
          %795 = vmatprep.subr.mxu0 0.0
          %796 = vmatpush2.msra.mxu0 0.0
          %797 = vmatprep.subr.mxu0 0.0
          %798 = vmatpush2.msra.mxu0 0.0
          %799 = vmatprep.subr.mxu0 0.0
          %800 = vmatpush2.msra.mxu0 0.0
          %801 = vmatprep.subr.mxu0 0.0
          %802 = vmatpush2.msra.mxu0 0.0
          %803 = vmatprep.subr.mxu0 0.0
          %804 = vmatpush2.msra.mxu0 0.0
          %805 = vmatprep.mubr.f32.mxu0 0.0
          %806 = vmatmul.mubr.f32.gmra.mxu0 %v736
          %v807 = vpop.f32.mrf.mxu0
          %v808 = vadd.f32 %v728, %v807
          %v809 = vpop.f32.mrf.mxu0
          %v810 = vadd.f32 %v728, %v809
          %811 = vmatprep.mubr.f32.mxu0 0.0
          %812 = vmatmul.mubr.f32.gmra.mxu0 %v739
          %v813 = vpop.f32.mrf.mxu0
          %v814 = vadd.f32 %v733, %v813
          %v815 = vpop.f32.mrf.mxu0
          %v816 = vadd.f32 %v733, %v815
          %817 = vdwg.mxu0
          %818 = vst [vmem:[%s312] sm:$0xff] %v808
          %819 = vst [vmem:[%s312 + $0x8] sm:$0xff] %v810
          %820 = vst [vmem:[%s312 + $0x10] sm:$0xff] %v814
          %821 = vst [vmem:[%s312 + $0x18] sm:$0xff] %v816
        $region60: #{tpu_custom_call.1} parent=47 // pred_fallthru
          _
        %s822 = sand.u32 %s198, 1
        %s823 = scalar_lea.sflag [#allocation7], %s822
        %s824 = sand.u32 %s198, 1
        %s825 = smul.addr %s824, 32
        %s826 = scalar_lea.vmem [#allocation8], %s825
        // Predicated region
        $region61: #{tpu_custom_call.1} parent=47 // pred_check
          %p827 = pneg %p208
        $region62: #{tpu_custom_call.1} parent=47 // pred_check_branch
          %829 = sbr.rel (%p827) target = $region64
        $region63: #{tpu_custom_call.1} parent=47 // pred_region
          %s831 = ssub.s32 512, 512
          %832 = vsyncadd %s823, %s831
          %s833 = smul.addr %s28, 4
          %s834 = smul.addr %s833, 128
          %s835 = scalar_lea.hbm %s7, %s834
          %s836 = sshll.u32 %s826, 4
          %s837 = int_to_ptr.vmem [resolvable:$true] %s836
          %842 = dma.vmem_to_hbm [thread:$0]  %s837, 512, %s835, %s823, 256, 256, 16
        $region64: #{tpu_custom_call.1} parent=47 // pred_fallthru
          _
      $region48: #{tpu_custom_call.1} parent=5 // pred_fallthru
        _
      %p843 = scmp.le.s32.totalorder 2, %s19
      // Predicated region
      $region65: #{tpu_custom_call.1} parent=5 // pred_check
        %p844 = pneg %p843
      $region66: #{tpu_custom_call.1} parent=5 // pred_check_branch
        %846 = sbr.rel (%p844) target = $region68
      $region67: #{tpu_custom_call.1} parent=5 // pred_region
        %s847 = ssub.s32 %s19, 2
        // Predicated region
        $region69: #{tpu_custom_call.1} parent=67 // pred_check
          %p848 = pneg %p214
        $region70: #{tpu_custom_call.1} parent=67 // pred_check_branch
          %850 = sbr.rel (%p848) target = $region72
        $region71: #{tpu_custom_call.1} parent=67 // pred_region
          %s851 = sand.u32 %s199, 1
          %s852 = scalar_lea.sflag [#allocation7], %s851
          %s853 = sand.u32 %s199, 1
          %s854 = smul.addr %s853, 32
          %s855 = scalar_lea.vmem [#allocation8], %s854
          %856 = dma.done %s852, 512
        $region72: #{tpu_custom_call.1} parent=67 // pred_fallthru
          _
      $region68: #{tpu_custom_call.1} parent=5 // pred_fallthru
        _
    $region6: #{tpu_custom_call.1} parent=1 // loop_footer
      %s23 = sadd.s32 1, %s19
    $region7: #{tpu_custom_call.1} parent=1 // loop_footer_branch
      %18 = sbr.rel target = $region3
    $region8: #{tpu_custom_call.1} parent=1 // loop_exit
      _
    %857 = vsyncpa [#allocation6], 1
    %s858 = scalar_lea.sflag [#allocation6], 1
    %859 = vsyncpa %s858, 1
    %860 = vsyncpa [#allocation7], 1
    %s861 = scalar_lea.sflag [#allocation7], 1
    %862 = vsyncpa %s861, 1

</llo_original>
